<compile_context>
chip_gen: v6e
topology: v6e:2x2x1
jax: 0.10.0
libtpu: 0.0.40
codegen_flags: <defaults>
</compile_context>

<pallas_src>
import functools

import jax
import jax.numpy as jnp
from jax.experimental import pallas as pl
from jax.experimental.pallas import tpu as pltpu


_VMEM_LIMIT_BYTES = 48 * 1024 * 1024   # safe headroom on v7x (64 MiB physical)
_TARGET_TILE_BYTES = 2 * 1024 * 1024   # ~2 MiB output per grid step


def _round_up(v: int, m: int) -> int:
    return ((v + m - 1) // m) * m


# ----------------------------------------------------------------------------
# Folded (lane-dense) kernels.  k original rows share one k*C-lane output row.
# aug[r, j] = x[r*k + j] + j*C (the flat "hot" lane in folded row r), or -1
# when the index is invalid.
# ----------------------------------------------------------------------------
def _folded_or_kernel(aug_ref, o_ref):
    # aug_ref: (tnf, k) int32 with k <= 4 -> 2k-1 VPU ops per output vreg,
    # still store-bound.
    cols = jax.lax.broadcasted_iota(jnp.int32, o_ref.shape, 1)
    k = aug_ref.shape[1]
    hit = cols == aug_ref[:, 0:1]
    for j in range(1, k):
        hit = hit | (cols == aug_ref[:, j:j + 1])
    o_ref[...] = hit.astype(o_ref.dtype)


def _folded_cmp_kernel(cmp_ref, o_ref):
    # cmp_ref: (tnf, lanes) int8 per-lane comparand (hot lane id or -1).
    # Single compare per output vreg; avoids the k-way VALU chain for k > 4.
    cols = jax.lax.broadcasted_iota(jnp.int32, o_ref.shape, 1)
    o_ref[...] = (cols == cmp_ref[...].astype(jnp.int32)).astype(o_ref.dtype)


def _one_hot_folded(x_i32: jax.Array, num_classes: int, k: int,
                    out_dtype) -> jax.Array:
    n = x_i32.shape[0]
    c = num_classes
    lanes = k * c          # <= 128
    nf = n // k            # exact by construction (k | n)

    # Cheap wrapper glue on the tiny index vector (O(N) ints).
    valid = (x_i32 >= 0) & (x_i32 < c)
    offs = (jnp.arange(n, dtype=jnp.int32) % k) * c
    aug = jnp.where(valid, x_i32 + offs, -1).reshape(nf, k)

    # Tile rows: single block while output <= 512 KiB, otherwise 2+ grid steps
    # with up to ~2 MiB of output per step.
    if nf <= 1024:
        tnf = _round_up(nf, 8)
    else:
        tnf = min(4096, _round_up((nf + 1) // 2, 8))
    grid = (pl.cdiv(nf, tnf),)

    if k <= 4:
        kernel = _folded_or_kernel
        inp = aug
        in_spec = pl.BlockSpec((tnf, k), lambda i: (i, 0))
        in_bytes = nf * k * 4
    else:
        kernel = _folded_cmp_kernel
        # comparand[r, l] = aug[r, l // c]; values in [-1, 127] fit int8.
        inp = jnp.repeat(aug, c, axis=1).astype(jnp.int8)
        in_spec = pl.BlockSpec((tnf, lanes), lambda i: (i, 0))
        in_bytes = nf * lanes

    out_itemsize = jnp.dtype(out_dtype).itemsize
    out = pl.pallas_call(
        kernel,
        out_shape=jax.ShapeDtypeStruct((nf, lanes), out_dtype),
        grid=grid,
        in_specs=[in_spec],
        out_specs=pl.BlockSpec((tnf, lanes), lambda i: (i, 0)),
        compiler_params=pltpu.CompilerParams(
            dimension_semantics=("parallel",),
            vmem_limit_bytes=_VMEM_LIMIT_BYTES,
        ),
        cost_estimate=pl.CostEstimate(
            flops=0, transcendentals=0,
            bytes_accessed=nf * lanes * out_itemsize + in_bytes),
    )(inp)

    # Row-major un-fold: contiguous reinterpretation, no extra HBM pass.
    return out.reshape(n, c)


# ----------------------------------------------------------------------------
# General kernel: (row-tile x class-tile) grid, exact (N, C) output.
# The (tn, 1) index block stays resident across the class axis; the class-tile
# offset is applied to the index column (1 vreg) instead of the full iota.
# ----------------------------------------------------------------------------
def _general_kernel(x_ref, o_ref):
    tc = o_ref.shape[1]
    local = x_ref[...] - pl.program_id(1) * tc
    cols = jax.lax.broadcasted_iota(jnp.int32, o_ref.shape, 1)
    o_ref[...] = (cols == local).astype(o_ref.dtype)


def _one_hot_general(x_i32: jax.Array, num_classes: int, out_dtype) -> jax.Array:
    n = x_i32.shape[0]
    c = num_classes

    # Full class width per block whenever reasonable (last dim == array dim is
    # always legal, even when C is not a multiple of 128 -> masked tail vst,
    # no padding, no slice).  Only very large C gets class-tiled.
    tc = c if c <= 4096 else 2048
    grid_c = pl.cdiv(c, tc)

    # Size the row tile by bytes (~2 MiB of output per step); ensure >= 2 grid
    # steps for big outputs so v7x's two TensorCores both get work.
    target_rows = max(8, (_TARGET_TILE_BYTES // (tc * 4)) // 8 * 8)
    if target_rows >= n:
        tn = _round_up(n, 8) if n <= 2048 else _round_up((n + 1) // 2, 8)
    else:
        tn = min(target_rows, 8192)
    grid = (pl.cdiv(n, tn), grid_c)

    x_col = x_i32.reshape(n, 1)
    out_itemsize = jnp.dtype(out_dtype).itemsize
    return pl.pallas_call(
        _general_kernel,
        out_shape=jax.ShapeDtypeStruct((n, c), out_dtype),
        grid=grid,
        in_specs=[pl.BlockSpec((tn, 1), lambda i, j: (i, 0))],
        out_specs=pl.BlockSpec((tn, tc), lambda i, j: (i, j)),
        compiler_params=pltpu.CompilerParams(
            dimension_semantics=("parallel", "parallel"),
            vmem_limit_bytes=_VMEM_LIMIT_BYTES,
        ),
        cost_estimate=pl.CostEstimate(
            flops=0, transcendentals=0,
            bytes_accessed=n * c * out_itemsize + n * 4),
    )(x_col)


@functools.partial(jax.jit, static_argnames=("num_classes", "out_dtype"))
def one_hot_1d(x: jax.Array, num_classes: int, out_dtype=jnp.float32) -> jax.Array:
    """Pallas equivalent of OneHot1d(num_classes).forward(x) for 1-D x."""
    assert x.ndim == 1, "OneHot1d kernel expects a 1-D index vector"
    n = x.shape[0]
    x_i32 = x.astype(jnp.int32)
    if n == 0:
        return jnp.zeros((0, num_classes), out_dtype)

    # Pick the largest fold factor k >= 2 with k*C <= 128 and k | N, so the
    # un-fold reshape is exact (no post-call slice => no extra HBM pass).
    k = 0
    kmax = 128 // num_classes
    if kmax >= 2:
        for d in range(min(kmax, n), 1, -1):
            if n % d == 0:
                k = d
                break
    if k >= 2:
        return _one_hot_folded(x_i32, num_classes, k, out_dtype)
    return _one_hot_general(x_i32, num_classes, out_dtype)


if __name__ == "__main__":
    key = jax.random.PRNGKey(0)
    k1, k2, k3, k4 = jax.random.split(key, 4)

    # Case 1: small C dividing 128, N multiple of k -> folded OR-chain path.
    c1, n1 = 32, 16
    x1 = jax.random.randint(k1, (n1,), 0, c1, dtype=jnp.int32)
    o1 = jax.block_until_ready(one_hot_1d(x1, c1))
    r1 = jax.nn.one_hot(x1, c1, dtype=jnp.float32)
    assert o1.shape == (n1, c1) and o1.dtype == jnp.float32
    assert bool(jnp.all(o1 == r1))

    # Case 2: large C (not a multiple of 128) -> general path, exact (N, C).
    c2, n2 = 200, 40
    x2 = jax.random.randint(k2, (n2,), 0, c2, dtype=jnp.int32)
    o2 = jax.block_until_ready(one_hot_1d(x2, c2))
    r2 = jax.nn.one_hot(x2, c2, dtype=jnp.float32)
    assert o2.shape == (n2, c2) and o2.dtype == jnp.float32
    assert bool(jnp.all(o2 == r2))

    # Case 3: tiny C (typical action one-hot) -> folded int8-comparand path.
    c3, n3 = 6, 32
    x3 = jax.random.randint(k3, (n3,), 0, c3, dtype=jnp.int32)
    o3 = jax.block_until_ready(one_hot_1d(x3, c3))
    r3 = jax.nn.one_hot(x3, c3, dtype=jnp.float32)
    assert o3.shape == (n3, c3) and o3.dtype == jnp.float32
    assert bool(jnp.all(o3 == r3))

    # Case 4: C=51 (C51 atoms), prime N with no usable fold -> general path
    # with a lane-masked C-wide block; includes an out-of-range index
    # (all-zero row, matching jax.nn.one_hot).
    c4, n4 = 51, 37
    x4 = jax.random.randint(k4, (n4,), 0, c4, dtype=jnp.int32)
    x4 = x4.at[5].set(-1)
    o4 = jax.block_until_ready(one_hot_1d(x4, c4))
    r4 = jax.nn.one_hot(x4, c4, dtype=jnp.float32)
    assert o4.shape == (n4, c4) and o4.dtype == jnp.float32
    assert bool(jnp.all(o4 == r4))

    # Case 5: optional low-precision output variant (values are exactly 0/1).
    o5 = jax.block_until_ready(one_hot_1d(x1, c1, out_dtype=jnp.bfloat16))
    r5 = jax.nn.one_hot(x1, c1, dtype=jnp.bfloat16)
    assert o5.dtype == jnp.bfloat16 and bool(jnp.all(o5 == r5))

    print("KERNEL_OK")
</pallas_src>

<mosaic_0001>
module attributes {stable_mosaic.version = 11 : i64} {
  func.func @_folded_or_kernel(%arg0: i32, %arg1: memref<8x4xi32, #tpu.memory_space<vmem>>, %arg2: memref<8x128xf32, #tpu.memory_space<vmem>>) attributes {dimension_semantics = [#tpu.dimension_semantics<parallel>], iteration_bounds = array<i64: 1>, scalar_prefetch = 0 : i64, scratch_operands = 0 : i64, tpu.core_type = #tpu.core_type<tc>, window_params = [{transform_indices = @transform_0, window_bounds = array<i64: 8, 4>}, {transform_indices = @transform_1, window_bounds = array<i64: 8, 128>}]} {
    %0 = tpu.iota {dimensions = array<i32: 1>} : vector<8x128xi32>
    %c0 = arith.constant 0 : index
    %c0_0 = arith.constant 0 : index
    %1 = vector.load %arg1[%c0, %c0_0] : memref<8x4xi32, #tpu.memory_space<vmem>>, vector<8x1xi32>
    %2 = vector.broadcast %1 : vector<8x1xi32> to vector<8x128xi32>
    %3 = arith.cmpi eq, %0, %2 : vector<8x128xi32>
    %c0_1 = arith.constant 0 : index
    %c1 = arith.constant 1 : index
    %4 = vector.load %arg1[%c0_1, %c1] : memref<8x4xi32, #tpu.memory_space<vmem>>, vector<8x1xi32>
    %5 = vector.broadcast %4 : vector<8x1xi32> to vector<8x128xi32>
    %6 = arith.cmpi eq, %0, %5 : vector<8x128xi32>
    %7 = arith.ori %3, %6 : vector<8x128xi1>
    %c0_2 = arith.constant 0 : index
    %c2 = arith.constant 2 : index
    %8 = vector.load %arg1[%c0_2, %c2] : memref<8x4xi32, #tpu.memory_space<vmem>>, vector<8x1xi32>
    %9 = vector.broadcast %8 : vector<8x1xi32> to vector<8x128xi32>
    %10 = arith.cmpi eq, %0, %9 : vector<8x128xi32>
    %11 = arith.ori %7, %10 : vector<8x128xi1>
    %c0_3 = arith.constant 0 : index
    %c3 = arith.constant 3 : index
    %12 = vector.load %arg1[%c0_3, %c3] : memref<8x4xi32, #tpu.memory_space<vmem>>, vector<8x1xi32>
    %13 = vector.broadcast %12 : vector<8x1xi32> to vector<8x128xi32>
    %14 = arith.cmpi eq, %0, %13 : vector<8x128xi32>
    %15 = arith.ori %11, %14 : vector<8x128xi1>
    %16 = arith.extui %15 : vector<8x128xi1> to vector<8x128xi32>
    %17 = arith.sitofp %16 : vector<8x128xi32> to vector<8x128xf32>
    %c0_4 = arith.constant 0 : index
    %c0_5 = arith.constant 0 : index
    %18 = vector.load %arg2[%c0_4, %c0_5] : memref<8x128xf32, #tpu.memory_space<vmem>>, vector<8x128xf32>
    tpu.vector_store %arg2[%c0_4, %c0_5], %17 {strides = array<i32>} : memref<8x128xf32, #tpu.memory_space<vmem>>, vector<8x128xf32>,
    return
  }
  func.func @transform_0(%arg0: i32) -> (i32, i32) {
    %c0_i32 = arith.constant 0 : i32
    %c0_i32_0 = arith.constant 0 : i32
    return %arg0, %c0_i32 : i32, i32
  }
  func.func @transform_1(%arg0: i32) -> (i32, i32) {
    %c0_i32 = arith.constant 0 : i32
    %c0_i32_0 = arith.constant 0 : i32
    return %arg0, %c0_i32 : i32, i32
  }
}

</mosaic_0001>

<llo_original>
// kernel: one_hot_1d.1
$region0: #{one_hot_1d.1}
  #allocation0 [shape = 'u32[]', space=smem, size = 0x4, offset = 0x4, fixed_abs, tag = 'smem constant byte address 0x4 - core index']
  #allocation1 [shape = 'u32[144,128]{1,0:T(1,128)}', space=vmem, size = 0x12000, scoped, tag = 'internal scratch']
  %s0 = inlined_call_operand.vmem [shape: s32[4,4], index: 0, kind: input, shape index: {}]
  %s1 = inlined_call_operand.vmem [shape: f32[4,128], index: 1, kind: output, shape index: {}]
  %s2 = sld [smem:[#allocation0]]
  $region44: #{one_hot_1d.1} parent=0
    _
  %s4 = ssub.s32 1, %s2
  %s5 = scalar_select 0, %s4, %s2
  $region1: #{one_hot_1d.1} parent=0
    #allocation2 [shape = 'u8[4096]{0}', space=vmem, size = 0x1000, scoped, tag = 'output window, operand 0, single buffered']
    // Predicated region
    $region2: #{one_hot_1d.1} parent=1 // pred_check
      _
    $region3: #{one_hot_1d.1} parent=1 // pred_check_branch
      %7 = sbr.rel (0) target = $region5
    $region4: #{one_hot_1d.1} parent=1 // pred_region
      _
    $region5: #{one_hot_1d.1} parent=1 // pred_fallthru
      _
    %v8 = vlaneseq
    %v9 = vand.u32 %v8, 127
    %v10 = vld [vmem:[%s0] sm:$0xff]
    %11 = vset.pattern.permute.xlu0 0
    %12 = vperm.xlu0 %11, %v10
    %v13 = vpop.permute.xlu0 %12
    %vm14 = vcmp.eq.s32.totalorder %v9, %v13
    %15 = vset.pattern.permute.xlu0 1
    %16 = vperm.xlu0 %15, %v10
    %v17 = vpop.permute.xlu0 %16
    %vm18 = vcmp.eq.s32.totalorder %v9, %v17
    %vm19 = vmor %vm14, %vm18
    %20 = vset.pattern.permute.xlu0 2
    %21 = vperm.xlu0 %20, %v10
    %v22 = vpop.permute.xlu0 %21
    %vm23 = vcmp.eq.s32.totalorder %v9, %v22
    %vm24 = vmor %vm19, %vm23
    %25 = vset.pattern.permute.xlu0 3
    %26 = vperm.xlu0 %25, %v10
    %v27 = vpop.permute.xlu0 %26
    %vm28 = vcmp.eq.s32.totalorder %v9, %v27
    %vm29 = vmor %vm24, %vm28
    %v30 = vsel %vm29, 1, 0
    %v31 = vcvt.s32.f32 %v30
    %32 = vst [vmem:[#allocation2] sm:$0xff] %v31
    // Predicated region
    $region6: #{one_hot_1d.1} parent=1 // pred_check
      _
    $region7: #{one_hot_1d.1} parent=1 // pred_check_branch
      %34 = sbr.rel (0) target = $region9
    $region8: #{one_hot_1d.1} parent=1 // pred_region
      // Predicated region
      $region10: #{one_hot_1d.1} parent=8 // pred_check
        _
      $region11: #{one_hot_1d.1} parent=8 // pred_check_branch
        %36 = sbr.rel (0) target = $region13
      $region12: #{one_hot_1d.1} parent=8 // pred_region
        // Predicated region
        $region14: #{one_hot_1d.1} parent=12 // pred_check
          _
        $region15: #{one_hot_1d.1} parent=12 // pred_check_branch
          %38 = sbr.rel target = $region17
        $region16: #{one_hot_1d.1} parent=12 // pred_region
          // Predicated region
          $region29: #{one_hot_1d.1} parent=16 // pred_check
            _
          $region30: #{one_hot_1d.1} parent=16 // pred_check_branch
            %54 = sbr.rel (0) target = $region32
          $region31: #{one_hot_1d.1} parent=16 // pred_region
            %s56 = ssub.s32 16, 1
            loop: start=0, step=1, limit=1
            $region33: #{one_hot_1d.1} parent=31 // loop_pre_header
              _
            $region34: #{one_hot_1d.1} parent=31 // loop_header
              %s58 = sphi 0, %s62
              %p59 = scmp.ge.s32.totalorder %s58, 1
              %s63 = sphi [#allocation2], [#allocation2]
              %s64 = sphi %s1, %s1
            $region35: #{one_hot_1d.1} parent=31 // loop_header_branch
              %61 = sbr.rel (%p59) target = $region39
            $region36: #{one_hot_1d.1} parent=31 // loop_body
              %v65 = vld [vmem:[%s63] sm:%s56]
              %66 = vst [vmem:[%s64] sm:%s56] %v65
            $region37: #{one_hot_1d.1} parent=31 // loop_footer
              %s62 = sadd.s32 1, %s58
            $region38: #{one_hot_1d.1} parent=31 // loop_footer_branch
              %57 = sbr.rel target = $region34
            $region39: #{one_hot_1d.1} parent=31 // loop_exit
              _
          $region32: #{one_hot_1d.1} parent=16 // pred_fallthru
            _
        $region17: #{one_hot_1d.1} parent=12 // pred_fallthru
          _
        // Predicated region
        $region18: #{one_hot_1d.1} parent=12 // pred_check
          _
        $region19: #{one_hot_1d.1} parent=12 // pred_check_branch
          %40 = sbr.rel (0) target = $region21
        $region20: #{one_hot_1d.1} parent=12 // pred_region
          %s42 = ssub.s32 16, 1
          loop: start=0, step=1, limit=1
          $region22: #{one_hot_1d.1} parent=20 // loop_pre_header
            _
          $region23: #{one_hot_1d.1} parent=20 // loop_header
            %s44 = sphi 0, %s48
            %p45 = scmp.ge.s32.totalorder %s44, 1
            %s49 = sphi [#allocation2], [#allocation2]
            %s50 = sphi %s1, %s1
          $region24: #{one_hot_1d.1} parent=20 // loop_header_branch
            %47 = sbr.rel (%p45) target = $region28
          $region25: #{one_hot_1d.1} parent=20 // loop_body
            %v51 = vld [vmem:[%s49] sm:%s42]
            %52 = vst [vmem:[%s50] sm:%s42] %v51
          $region26: #{one_hot_1d.1} parent=20 // loop_footer
            %s48 = sadd.s32 1, %s44
          $region27: #{one_hot_1d.1} parent=20 // loop_footer_branch
            %43 = sbr.rel target = $region23
          $region28: #{one_hot_1d.1} parent=20 // loop_exit
            _
        $region21: #{one_hot_1d.1} parent=12 // pred_fallthru
          _
      $region13: #{one_hot_1d.1} parent=8 // pred_fallthru
        _
      %67 = vnop
    $region9: #{one_hot_1d.1} parent=1 // pred_fallthru
      _
    // Predicated region
    $region40: #{one_hot_1d.1} parent=1 // pred_check
      _
    $region41: #{one_hot_1d.1} parent=1 // pred_check_branch
      %69 = sbr.rel (0) target = $region43
    $region42: #{one_hot_1d.1} parent=1 // pred_region
      _
    $region43: #{one_hot_1d.1} parent=1 // pred_fallthru
      _

</llo_original>
